<compile_context>
chip_gen: v5e
topology: v5e:2x2
jax: 0.10.0
libtpu: 0.0.40
codegen_flags: <defaults>
</compile_context>

<pallas_src>
import functools

import jax
import jax.numpy as jnp
from jax.experimental import pallas as pl
from jax.experimental.pallas import tpu as pltpu


# ------------------------------------------------------------------ kernels ----

def _conv_stats_kernel(w_ref, p_ref, out_ref, sum_ref, m2_ref, *, tm, m_valid):
    """One (phase, M-tile) step: y = W @ P  ((Cout, tm), f32 accum), plus per-tile
    per-channel partial sum and mean-centered sum-of-squares for BatchNorm."""
    i = pl.program_id(1)

    y = jnp.dot(w_ref[0], p_ref[0], preferred_element_type=jnp.float32)   # (Cout, tm)
    out_ref[...] = y[None]

    # valid (non-padded) pixels in this tile; padded patch columns are exact zeros
    cnt = jnp.minimum(jnp.float32(tm), (m_valid - i * tm).astype(jnp.float32))
    s = jnp.sum(y, axis=1, keepdims=True)                   # (Cout, 1)
    mu = s / cnt
    d = y - mu
    # sum over *valid* lanes of (y - mu)^2: each padded lane contributes exactly mu^2
    m2 = jnp.sum(d * d, axis=1, keepdims=True) - (jnp.float32(tm) - cnt) * (mu * mu)

    sum_ref[...] = s[None, None]                            # (1, 1, Cout, 1)
    m2_ref[...] = m2[None, None]


def _bn_relu_kernel(x_ref, scale_ref, shift_ref, o_ref):
    """Elementwise relu(x * scale + shift) on lane-dense (Cout, tm) tiles."""
    o_ref[...] = jnp.maximum(x_ref[...] * scale_ref[...] + shift_ref[...], 0.0)


# ------------------------------------------------------------------ wrapper ----

def _taps_1d(d, S):
    """For output phase offset d (0 <= d < S) of ConvTranspose2d(k=2S, stride=S,
    pad=S//2), return the two (padded_slice_start, kernel_index) taps along one axis."""
    P = S // 2
    ts = (0, 1) if d + P < S else (-1, 0)
    return [(1 - t, S * t + d + P) for t in ts]


def upsampling_forward(x, weight, bias, gamma, beta, *, scale_factor=2, eps=1e-5,
                       tm=1024, compute_dtype=jnp.bfloat16):
    """x: (N, Cin, H, W).  weight: (Cin, Cout, K, K) (PyTorch ConvTranspose2d layout).
    Returns (N, Cout, S*H, S*W) float32.  `bias` accepted for API parity; it is a
    mathematical no-op under training-mode BatchNorm and is dropped."""
    del bias
    S = int(scale_factor)
    if S % 2 != 0:
        raise NotImplementedError("sub-pixel decomposition implemented for even scale_factor")
    N, Cin, H, W = x.shape
    Cout = weight.shape[1]
    S2 = S * S
    KD = 4 * Cin                      # 2x2 taps per phase, all input channels
    M0 = N * H * W                    # pixels per phase (= total output pixels / S^2)

    # ---- glue: per-phase patch matrices (KD, M0) and weight matrices (Cout, KD) ----
    xpad = jnp.pad(x.astype(jnp.float32), ((0, 0), (0, 0), (1, 1), (1, 1)))
    p_list, w_list = [], []
    for dy in range(S):
        for dx in range(S):
            taps_y, taps_x = _taps_1d(dy, S), _taps_1d(dx, S)
            cols, wrows = [], []
            for (sy, ky) in taps_y:
                for (sx, kx) in taps_x:
                    cols.append(xpad[:, :, sy:sy + H, sx:sx + W])      # (N, Cin, H, W)
                    wrows.append(weight[:, :, ky, kx])                 # (Cin, Cout)
            pt = jnp.stack(cols, axis=0).transpose(0, 2, 1, 3, 4)      # (4, Cin, N, H, W)
            p_list.append(pt.reshape(KD, M0))
            w_list.append(jnp.stack(wrows, axis=0).reshape(KD, Cout).T)  # (Cout, KD)
    patches = jnp.stack(p_list, axis=0)           # (S2, KD, M0)
    wmats = jnp.stack(w_list, axis=0)             # (S2, Cout, KD)

    # ---- tile along the pixel (lane) axis; pad to a 128-aligned multiple of tm ----
    tm = max(128, (int(tm) // 128) * 128)
    tm = min(tm, pl.cdiv(M0, 128) * 128)
    grid_m = pl.cdiv(M0, tm)
    Mp = grid_m * tm
    if Mp > M0:
        patches = jnp.pad(patches, ((0, 0), (0, 0), (0, Mp - M0)))
    patches = patches.astype(compute_dtype)
    wmats = wmats.astype(compute_dtype)

    esize = jnp.dtype(compute_dtype).itemsize
    blk_bytes = KD * tm * esize + Cout * KD * esize + Cout * tm * 4 + 8 * Cout * 4
    vmem_limit = int(min(64 * 2 ** 20, max(32 * 2 ** 20, 4 * blk_bytes)))
    # TODO(synk): for very large Cin (KD*tm blocks of several MiB) add a K grid axis
    # with an f32 accumulator scratch instead of loading the full KD per step (v7x
    # 64 MiB VMEM budget); unnecessary at these sizes.

    # ---- kernel 1: per-phase matmul + per-tile partial BN statistics ----
    conv_out, sum_part, m2_part = pl.pallas_call(
        functools.partial(_conv_stats_kernel, tm=tm, m_valid=M0),
        out_shape=(jax.ShapeDtypeStruct((S2, Cout, Mp), jnp.float32),
                   jax.ShapeDtypeStruct((S2, grid_m, Cout, 1), jnp.float32),
                   jax.ShapeDtypeStruct((S2, grid_m, Cout, 1), jnp.float32)),
        grid_spec=pltpu.PrefetchScalarGridSpec(
            num_scalar_prefetch=0,
            grid=(S2, grid_m),
            in_specs=[pl.BlockSpec((1, Cout, KD), lambda p, i: (p, 0, 0)),
                      pl.BlockSpec((1, KD, tm), lambda p, i: (p, 0, i))],
            out_specs=[pl.BlockSpec((1, Cout, tm), lambda p, i: (p, 0, i)),
                       pl.BlockSpec((1, 1, Cout, 1), lambda p, i: (p, i, 0, 0)),
                       pl.BlockSpec((1, 1, Cout, 1), lambda p, i: (p, i, 0, 0))]),
        compiler_params=pltpu.CompilerParams(
            dimension_semantics=("parallel", "parallel"),
            vmem_limit_bytes=vmem_limit),
    )(wmats, patches)

    # ---- exact combination of per-tile partial statistics (tiny, plain JAX) ----
    cnt = jnp.minimum(tm, M0 - jnp.arange(grid_m) * tm).astype(jnp.float32)  # (grid_m,)
    s = sum_part[..., 0]                          # (S2, grid_m, Cout)
    m2 = m2_part[..., 0]
    total = jnp.float32(S2 * M0)                  # = N * OH * OW
    mean = jnp.sum(s, axis=(0, 1)) / total        # (Cout,)
    mu_t = s / cnt[None, :, None]
    m2_tot = jnp.sum(m2, axis=(0, 1)) + jnp.sum(
        cnt[None, :, None] * (mu_t - mean[None, None, :]) ** 2, axis=(0, 1))
    var = m2_tot / total                          # biased var (BN normalization)
    inv_std = jax.lax.rsqrt(var + eps)
    scale_vec = gamma.astype(jnp.float32) * inv_std
    shift_vec = beta.astype(jnp.float32) - mean * scale_vec
    scale3 = scale_vec.reshape(1, Cout, 1)
    shift3 = shift_vec.reshape(1, Cout, 1)

    # ---- kernel 2: BN affine + ReLU (lane-dense elementwise) ----
    y_out = pl.pallas_call(
        _bn_relu_kernel,
        out_shape=jax.ShapeDtypeStruct((S2, Cout, Mp), jnp.float32),
        grid_spec=pltpu.PrefetchScalarGridSpec(
            num_scalar_prefetch=0,
            grid=(S2, grid_m),
            in_specs=[pl.BlockSpec((1, Cout, tm), lambda p, i: (p, 0, i)),
                      pl.BlockSpec((1, Cout, 1), lambda p, i: (0, 0, 0)),
                      pl.BlockSpec((1, Cout, 1), lambda p, i: (0, 0, 0))],
            out_specs=pl.BlockSpec((1, Cout, tm), lambda p, i: (p, 0, i))),
        compiler_params=pltpu.CompilerParams(
            dimension_semantics=("parallel", "parallel"),
            vmem_limit_bytes=vmem_limit),
    )(conv_out, scale3, shift3)

    # ---- de-interleave phases back to NCHW ----
    # TODO(synk): this final (n, co, qy, dy, qx, dx) rearrangement is still one XLA
    # transpose; it could be fused into the BN/ReLU kernel with an in-kernel lane
    # interleave of the dx phases if it ever dominates profiles.
    y = y_out[:, :, :M0].reshape(S, S, Cout, N, H, W)   # (dy, dx, co, n, qy, qx)
    y = y.transpose(3, 2, 4, 0, 5, 1)                   # (n, co, qy, dy, qx, dx)
    return y.reshape(N, Cout, S * H, S * W)


# --------------------------------------------- pure-JAX reference (sanity check) ----

def reference(x, weight, bias, gamma, beta, *, scale_factor=2, eps=1e-5):
    K = 2 * scale_factor
    S = scale_factor
    P = scale_factor // 2
    Cout = weight.shape[1]
    wflip = jnp.transpose(weight, (1, 0, 2, 3))[:, :, ::-1, ::-1]   # (Cout, Cin, K, K)
    y = jax.lax.conv_general_dilated(
        x.astype(jnp.float32), wflip.astype(jnp.float32),
        window_strides=(1, 1),
        padding=[(K - 1 - P, K - 1 - P), (K - 1 - P, K - 1 - P)],
        lhs_dilation=(S, S),
        dimension_numbers=("NCHW", "OIHW", "NCHW"))
    y = y + bias.reshape(1, Cout, 1, 1)
    mean = jnp.mean(y, axis=(0, 2, 3), keepdims=True)
    var = jnp.mean((y - mean) ** 2, axis=(0, 2, 3), keepdims=True)
    yn = (y - mean) / jnp.sqrt(var + eps)
    yn = yn * gamma.reshape(1, Cout, 1, 1) + beta.reshape(1, Cout, 1, 1)
    return jnp.maximum(yn, 0.0)


if __name__ == "__main__":
    key = jax.random.PRNGKey(0)
    k1, k2, k3, k4, k5 = jax.random.split(key, 5)

    N, Cin, H, W = 2, 4, 16, 16
    Cout, S = 8, 2
    K = 2 * S

    x = jax.random.normal(k1, (N, Cin, H, W), jnp.float32)
    fan = Cin * K * K
    weight = jax.random.normal(k2, (Cin, Cout, K, K), jnp.float32) / jnp.sqrt(fan)
    bias = 0.1 * jax.random.normal(k3, (Cout,), jnp.float32)
    gamma = 1.0 + 0.1 * jax.random.normal(k4, (Cout,), jnp.float32)
    beta = 0.1 * jax.random.normal(k5, (Cout,), jnp.float32)

    fwd = jax.jit(upsampling_forward,
                  static_argnames=("scale_factor", "eps", "tm", "compute_dtype"))

    # default perf configuration: bf16 matmul operands, f32 accumulation / stats
    y_bf16 = jax.block_until_ready(fwd(x, weight, bias, gamma, beta, scale_factor=S))
    # f32 operands for a tight numerical check of the decomposition / stats path
    y_f32 = jax.block_until_ready(
        fwd(x, weight, bias, gamma, beta, scale_factor=S, compute_dtype=jnp.float32))

    assert y_bf16.shape == (N, Cout, S * H, S * W)
    assert y_f32.shape == (N, Cout, S * H, S * W)

    y_ref = reference(x, weight, bias, gamma, beta, scale_factor=S)
    ok_f32 = bool(jnp.allclose(y_f32, y_ref, atol=1e-3, rtol=1e-3))
    # bf16 operand rounding (~2^-9 relative) amplified by BN normalization -> looser tol
    ok_bf16 = bool(jnp.allclose(y_bf16, y_ref, atol=5e-2, rtol=5e-2))

    if ok_f32 and ok_bf16:
        print("KERNEL_OK")
    else:
        print("MISMATCH: f32 max err =", float(jnp.max(jnp.abs(y_f32 - y_ref))),
              " bf16 max err =", float(jnp.max(jnp.abs(y_bf16 - y_ref))))
</pallas_src>

<mosaic_0001>
module attributes {stable_mosaic.version = 11 : i64} {
  func.func @_conv_stats_kernel(%arg0: i32, %arg1: i32, %arg2: memref<1x8x16xbf16, #tpu.memory_space<vmem>>, %arg3: memref<1x16x512xbf16, #tpu.memory_space<vmem>>, %arg4: memref<1x8x512xf32, #tpu.memory_space<vmem>>, %arg5: memref<1x1x8x1xf32, #tpu.memory_space<vmem>>, %arg6: memref<1x1x8x1xf32, #tpu.memory_space<vmem>>) attributes {dimension_semantics = [#tpu.dimension_semantics<parallel>, #tpu.dimension_semantics<parallel>], iteration_bounds = array<i64: 4, 1>, scalar_prefetch = 0 : i64, scratch_operands = 0 : i64, tpu.core_type = #tpu.core_type<tc>, window_params = [{transform_indices = @transform_0, window_bounds = array<i64: 1, 8, 16>}, {transform_indices = @transform_1, window_bounds = array<i64: 1, 16, 512>}, {transform_indices = @transform_2, window_bounds = array<i64: 1, 8, 512>}, {transform_indices = @transform_3, window_bounds = array<i64: 1, 1, 8, 1>}, {transform_indices = @transform_4, window_bounds = array<i64: 1, 1, 8, 1>}]} {
    %c0 = arith.constant 0 : index
    %c0_0 = arith.constant 0 : index
    %c0_1 = arith.constant 0 : index
    %0 = vector.load %arg2[%c0, %c0_0, %c0_1] : memref<1x8x16xbf16, #tpu.memory_space<vmem>>, vector<1x8x16xbf16>
    %1 = vector.shape_cast %0 : vector<1x8x16xbf16> to vector<8x16xbf16>
    %c0_2 = arith.constant 0 : index
    %c0_3 = arith.constant 0 : index
    %c0_4 = arith.constant 0 : index
    %2 = vector.load %arg3[%c0_2, %c0_3, %c0_4] : memref<1x16x512xbf16, #tpu.memory_space<vmem>>, vector<1x16x512xbf16>
    %3 = vector.shape_cast %2 : vector<1x16x512xbf16> to vector<16x512xbf16>
    %cst = arith.constant dense<0.000000e+00> : vector<8x512xf32>
    %4 = tpu.matmul %1, %3, %cst {dimension_numbers = #tpu.dot_dimension_numbers<[1], [0], [0], [1], [0, 0, 1, 1], [], []>} : vector<8x16xbf16>, vector<16x512xbf16>, vector<8x512xf32> -> vector<8x512xf32>
    %5 = vector.shape_cast %4 : vector<8x512xf32> to vector<1x8x512xf32>
    %c0_5 = arith.constant 0 : index
    %c0_6 = arith.constant 0 : index
    %c0_7 = arith.constant 0 : index
    %6 = vector.load %arg4[%c0_5, %c0_6, %c0_7] : memref<1x8x512xf32, #tpu.memory_space<vmem>>, vector<1x8x512xf32>
    tpu.vector_store %arg4[%c0_5, %c0_6, %c0_7], %5 {strides = array<i32>} : memref<1x8x512xf32, #tpu.memory_space<vmem>>, vector<1x8x512xf32>,
    %c512_i32 = arith.constant 512 : i32
    %7 = arith.muli %arg1, %c512_i32 : i32
    %c512_i32_8 = arith.constant 512 : i32
    %8 = arith.subi %c512_i32_8, %7 : i32
    %9 = arith.sitofp %8 : i32 to f32
    %cst_9 = arith.constant 5.120000e+02 : f32
    %10 = arith.minimumf %cst_9, %9 : f32
    %cst_10 = arith.constant dense<0.000000e+00> : vector<8xf32>
    %11 = vector.multi_reduction <add>, %4, %cst_10 [1] : vector<8x512xf32> to vector<8xf32>
    %12 = vector.shape_cast %11 : vector<8xf32> to vector<8x1xf32>
    %13 = vector.broadcast %10 : f32 to vector<8x1xf32>
    %14 = arith.divf %12, %13 : vector<8x1xf32>
    %15 = vector.broadcast %14 : vector<8x1xf32> to vector<8x512xf32>
    %16 = arith.subf %4, %15 : vector<8x512xf32>
    %17 = arith.mulf %16, %16 : vector<8x512xf32>
    %cst_11 = arith.constant dense<0.000000e+00> : vector<8xf32>
    %18 = vector.multi_reduction <add>, %17, %cst_11 [1] : vector<8x512xf32> to vector<8xf32>
    %19 = vector.shape_cast %18 : vector<8xf32> to vector<8x1xf32>
    %cst_12 = arith.constant 5.120000e+02 : f32
    %20 = arith.subf %cst_12, %10 : f32
    %21 = arith.mulf %14, %14 : vector<8x1xf32>
    %22 = vector.broadcast %20 : f32 to vector<8x1xf32>
    %23 = arith.mulf %22, %21 : vector<8x1xf32>
    %24 = arith.subf %19, %23 : vector<8x1xf32>
    %25 = vector.shape_cast %12 : vector<8x1xf32> to vector<1x1x8x1xf32>
    %c0_13 = arith.constant 0 : index
    %c0_14 = arith.constant 0 : index
    %c0_15 = arith.constant 0 : index
    %c0_16 = arith.constant 0 : index
    %26 = vector.load %arg5[%c0_13, %c0_14, %c0_15, %c0_16] : memref<1x1x8x1xf32, #tpu.memory_space<vmem>>, vector<1x1x8x1xf32>
    tpu.vector_store %arg5[%c0_13, %c0_14, %c0_15, %c0_16], %25 {strides = array<i32>} : memref<1x1x8x1xf32, #tpu.memory_space<vmem>>, vector<1x1x8x1xf32>,
    %27 = vector.shape_cast %24 : vector<8x1xf32> to vector<1x1x8x1xf32>
    %c0_17 = arith.constant 0 : index
    %c0_18 = arith.constant 0 : index
    %c0_19 = arith.constant 0 : index
    %c0_20 = arith.constant 0 : index
    %28 = vector.load %arg6[%c0_17, %c0_18, %c0_19, %c0_20] : memref<1x1x8x1xf32, #tpu.memory_space<vmem>>, vector<1x1x8x1xf32>
    tpu.vector_store %arg6[%c0_17, %c0_18, %c0_19, %c0_20], %27 {strides = array<i32>} : memref<1x1x8x1xf32, #tpu.memory_space<vmem>>, vector<1x1x8x1xf32>,
    return
  }
  func.func @transform_0(%arg0: i32, %arg1: i32) -> (i32, i32, i32) {
    %c0_i32 = arith.constant 0 : i32
    %c0_i32_0 = arith.constant 0 : i32
    %c0_i32_1 = arith.constant 0 : i32
    return %arg0, %c0_i32, %c0_i32_0 : i32, i32, i32
  }
  func.func @transform_1(%arg0: i32, %arg1: i32) -> (i32, i32, i32) {
    %c0_i32 = arith.constant 0 : i32
    %c0_i32_0 = arith.constant 0 : i32
    return %arg0, %c0_i32, %arg1 : i32, i32, i32
  }
  func.func @transform_2(%arg0: i32, %arg1: i32) -> (i32, i32, i32) {
    %c0_i32 = arith.constant 0 : i32
    %c0_i32_0 = arith.constant 0 : i32
    return %arg0, %c0_i32, %arg1 : i32, i32, i32
  }
  func.func @transform_3(%arg0: i32, %arg1: i32) -> (i32, i32, i32, i32) {
    %c0_i32 = arith.constant 0 : i32
    %c0_i32_0 = arith.constant 0 : i32
    %c0_i32_1 = arith.constant 0 : i32
    return %arg0, %arg1, %c0_i32, %c0_i32_0 : i32, i32, i32, i32
  }
  func.func @transform_4(%arg0: i32, %arg1: i32) -> (i32, i32, i32, i32) {
    %c0_i32 = arith.constant 0 : i32
    %c0_i32_0 = arith.constant 0 : i32
    %c0_i32_1 = arith.constant 0 : i32
    return %arg0, %arg1, %c0_i32, %c0_i32_0 : i32, i32, i32, i32
  }
}

module attributes {stable_mosaic.version = 11 : i64} {
  func.func @_bn_relu_kernel(%arg0: i32, %arg1: i32, %arg2: memref<1x8x512xf32, #tpu.memory_space<vmem>>, %arg3: memref<1x8x1xf32, #tpu.memory_space<vmem>>, %arg4: memref<1x8x1xf32, #tpu.memory_space<vmem>>, %arg5: memref<1x8x512xf32, #tpu.memory_space<vmem>>) attributes {dimension_semantics = [#tpu.dimension_semantics<parallel>, #tpu.dimension_semantics<parallel>], iteration_bounds = array<i64: 4, 1>, scalar_prefetch = 0 : i64, scratch_operands = 0 : i64, tpu.core_type = #tpu.core_type<tc>, window_params = [{transform_indices = @transform_0, window_bounds = array<i64: 1, 8, 512>}, {pipeline_mode = #tpu.pipeline_mode<synchronous>, transform_indices = @transform_1, window_bounds = array<i64: 1, 8, 1>}, {pipeline_mode = #tpu.pipeline_mode<synchronous>, transform_indices = @transform_2, window_bounds = array<i64: 1, 8, 1>}, {transform_indices = @transform_3, window_bounds = array<i64: 1, 8, 512>}]} {
    %c0 = arith.constant 0 : index
    %c0_0 = arith.constant 0 : index
    %c0_1 = arith.constant 0 : index
    %0 = vector.load %arg2[%c0, %c0_0, %c0_1] : memref<1x8x512xf32, #tpu.memory_space<vmem>>, vector<1x8x512xf32>
    %c0_2 = arith.constant 0 : index
    %c0_3 = arith.constant 0 : index
    %c0_4 = arith.constant 0 : index
    %1 = vector.load %arg3[%c0_2, %c0_3, %c0_4] : memref<1x8x1xf32, #tpu.memory_space<vmem>>, vector<1x8x1xf32>
    %2 = vector.broadcast %1 : vector<1x8x1xf32> to vector<1x8x512xf32>
    %3 = arith.mulf %0, %2 : vector<1x8x512xf32>
    %c0_5 = arith.constant 0 : index
    %c0_6 = arith.constant 0 : index
    %c0_7 = arith.constant 0 : index
    %4 = vector.load %arg4[%c0_5, %c0_6, %c0_7] : memref<1x8x1xf32, #tpu.memory_space<vmem>>, vector<1x8x1xf32>
    %5 = vector.broadcast %4 : vector<1x8x1xf32> to vector<1x8x512xf32>
    %6 = arith.addf %3, %5 : vector<1x8x512xf32>
    %cst = arith.constant 0.000000e+00 : f32
    %7 = vector.broadcast %cst : f32 to vector<1x8x512xf32>
    %8 = arith.maximumf %6, %7 : vector<1x8x512xf32>
    %c0_8 = arith.constant 0 : index
    %c0_9 = arith.constant 0 : index
    %c0_10 = arith.constant 0 : index
    %9 = vector.load %arg5[%c0_8, %c0_9, %c0_10] : memref<1x8x512xf32, #tpu.memory_space<vmem>>, vector<1x8x512xf32>
    tpu.vector_store %arg5[%c0_8, %c0_9, %c0_10], %8 {strides = array<i32>} : memref<1x8x512xf32, #tpu.memory_space<vmem>>, vector<1x8x512xf32>,
    return
  }
  func.func @transform_0(%arg0: i32, %arg1: i32) -> (i32, i32, i32) {
    %c0_i32 = arith.constant 0 : i32
    %c0_i32_0 = arith.constant 0 : i32
    return %arg0, %c0_i32, %arg1 : i32, i32, i32
  }
  func.func @transform_1(%arg0: i32, %arg1: i32) -> (i32, i32, i32) {
    %c0_i32 = arith.constant 0 : i32
    %c0_i32_0 = arith.constant 0 : i32
    %c0_i32_1 = arith.constant 0 : i32
    %c0_i32_2 = arith.constant 0 : i32
    return %c0_i32, %c0_i32_0, %c0_i32_1 : i32, i32, i32
  }
  func.func @transform_2(%arg0: i32, %arg1: i32) -> (i32, i32, i32) {
    %c0_i32 = arith.constant 0 : i32
    %c0_i32_0 = arith.constant 0 : i32
    %c0_i32_1 = arith.constant 0 : i32
    %c0_i32_2 = arith.constant 0 : i32
    return %c0_i32, %c0_i32_0, %c0_i32_1 : i32, i32, i32
  }
  func.func @transform_3(%arg0: i32, %arg1: i32) -> (i32, i32, i32) {
    %c0_i32 = arith.constant 0 : i32
    %c0_i32_0 = arith.constant 0 : i32
    return %arg0, %c0_i32, %arg1 : i32, i32, i32
  }
}

</mosaic_0001>

<llo_original>
// kernel: upsampling_forward.3
$region0: #{upsampling_forward.3}
  #allocation0 [shape = 'u32[]', space=smem, size = 0x4, offset = 0x4, fixed_abs, tag = 'smem constant byte address 0x4 - core index']
  #allocation1 [shape = 'u32[72,128]{1,0:T(1,128)}', space=vmem, size = 0x9000, scoped, tag = 'internal scratch']
  %s0 = inlined_call_operand.vmem [shape: f32[4,8,512], index: 0, kind: input, shape index: {}]
  %s1 = inlined_call_operand.vmem [shape: f32[1,8,1], index: 1, kind: input, shape index: {}]
  %s2 = inlined_call_operand.vmem [shape: f32[1,8,1], index: 2, kind: input, shape index: {}]
  %s3 = inlined_call_operand.vmem [shape: f32[4,8,512], index: 3, kind: output, shape index: {}]
  %s4 = sld [smem:[#allocation0]]
  $region45: #{upsampling_forward.3} parent=0
    _
  %s6 = ssub.s32 1, %s4
  %s7 = scalar_select 0, %s6, %s4
  loop: start=0, step=1, limit=6
  $region2: #{upsampling_forward.3} parent=0 // loop_pre_header
    _
  $region3: #{upsampling_forward.3} parent=0 // loop_header
    %s9 = sphi 0, %s13
    %p10 = scmp.ge.s32.totalorder %s9, 6
    %s16 = sphi 0, %s28
    %s17 = sphi 0, %s24
    %s18 = sphi 0, %s16
    %s19 = sphi 0, %s17
    %s20 = sphi 0, %s18
    %s21 = sphi 0, %s19
    %s33 = sphi 0, %s35
    %s36 = sphi 0, %s33
    %s37 = sphi 0, %s36
    %s53 = sphi 0, %s37
    %s57 = sphi 0, %s57
    %s59 = sphi 0, %s57
    %s60 = sphi 0, %s59
    %s74 = sphi 0, %s60
    %s78 = sphi 0, %s78
    %s80 = sphi 0, %s78
    %s81 = sphi 0, %s80
    %s95 = sphi 0, %s81
    %s103 = sphi 0, %s105
    %s106 = sphi 0, %s103
    %s107 = sphi 0, %s106
    %s123 = sphi 0, %s107
  $region4: #{upsampling_forward.3} parent=0 // loop_header_branch
    %12 = sbr.rel (%p10) target = $region8
  $region5: #{upsampling_forward.3} parent=0 // loop_body
    %s14 = ssub.s32 %s9, 1
    %s15 = ssub.s32 %s9, 2
    %s22 = sadd.s32 1, %s17
    %p23 = scmp.ge.s32.totalorder %s22, 1
    %s24 = scalar_select %p23, 0, %s22
    %s25 = sadd.s32 1, %s16
    %s26 = scalar_select %p23, %s25, %s16
    %p27 = scmp.ge.s32.totalorder %s26, 4
    %s28 = scalar_select %p27, 0, %s26
    %s29 = ssub.s32 %s16, %s28
    %s30 = ssub.s32 %s17, %s24
    %s31 = sor.u32 %s29, %s30
    %p32 = scmp.eq.s32.totalorder %s31, 0
    %s34 = sadd.s32 %s33, 1
    %s35 = scalar_select %p32, %s33, %s34
    %p38 = pneg %p32
    %p39 = scmp.eq.s32.totalorder %s9, 3
    %p40 = por %p38, %p39
    %p41 = scmp.ne.s32.totalorder %s33, %s36
    %p42 = scmp.eq.s32.totalorder %s9, 0
    %p43 = por %p41, %p42
    %p44 = scmp.ne.s32.totalorder %s33, %s36
    %p45 = scmp.eq.s32.totalorder %s14, 3
    %p46 = por %p44, %p45
    %p47 = scmp.ne.s32.totalorder %s36, %s37
    %p48 = scmp.eq.s32.totalorder %s14, 0
    %p49 = por %p47, %p48
    %p50 = scmp.ne.s32.totalorder %s36, %s37
    %p51 = scmp.eq.s32.totalorder %s15, 3
    %p52 = por %p50, %p51
    %p54 = scmp.ne.s32.totalorder %s37, %s53
    %p55 = scmp.eq.s32.totalorder %s15, 0
    %p56 = por %p54, %p55
    %s58 = sadd.s32 %s57, 1
    %p61 = scmp.eq.s32.totalorder %s9, 3
    %p62 = scmp.ne.s32.totalorder %s57, %s59
    %p63 = scmp.eq.s32.totalorder %s9, 0
    %p64 = por %p62, %p63
    %p65 = scmp.ne.s32.totalorder %s57, %s59
    %p66 = scmp.eq.s32.totalorder %s14, 3
    %p67 = por %p65, %p66
    %p68 = scmp.ne.s32.totalorder %s59, %s60
    %p69 = scmp.eq.s32.totalorder %s14, 0
    %p70 = por %p68, %p69
    %p71 = scmp.ne.s32.totalorder %s59, %s60
    %p72 = scmp.eq.s32.totalorder %s15, 3
    %p73 = por %p71, %p72
    %p75 = scmp.ne.s32.totalorder %s60, %s74
    %p76 = scmp.eq.s32.totalorder %s15, 0
    %p77 = por %p75, %p76
    %s79 = sadd.s32 %s78, 1
    %p82 = scmp.eq.s32.totalorder %s9, 3
    %p83 = scmp.ne.s32.totalorder %s78, %s80
    %p84 = scmp.eq.s32.totalorder %s9, 0
    %p85 = por %p83, %p84
    %p86 = scmp.ne.s32.totalorder %s78, %s80
    %p87 = scmp.eq.s32.totalorder %s14, 3
    %p88 = por %p86, %p87
    %p89 = scmp.ne.s32.totalorder %s80, %s81
    %p90 = scmp.eq.s32.totalorder %s14, 0
    %p91 = por %p89, %p90
    %p92 = scmp.ne.s32.totalorder %s80, %s81
    %p93 = scmp.eq.s32.totalorder %s15, 3
    %p94 = por %p92, %p93
    %p96 = scmp.ne.s32.totalorder %s81, %s95
    %p97 = scmp.eq.s32.totalorder %s15, 0
    %p98 = por %p96, %p97
    %s99 = ssub.s32 %s16, %s28
    %s100 = ssub.s32 %s17, %s24
    %s101 = sor.u32 %s99, %s100
    %p102 = scmp.eq.s32.totalorder %s101, 0
    %s104 = sadd.s32 %s103, 1
    %s105 = scalar_select %p102, %s103, %s104
    %p108 = pneg %p102
    %p109 = scmp.eq.s32.totalorder %s9, 3
    %p110 = por %p108, %p109
    %p111 = scmp.ne.s32.totalorder %s103, %s106
    %p112 = scmp.eq.s32.totalorder %s9, 0
    %p113 = por %p111, %p112
    %p114 = scmp.ne.s32.totalorder %s103, %s106
    %p115 = scmp.eq.s32.totalorder %s14, 3
    %p116 = por %p114, %p115
    %p117 = scmp.ne.s32.totalorder %s106, %s107
    %p118 = scmp.eq.s32.totalorder %s14, 0
    %p119 = por %p117, %p118
    %p120 = scmp.ne.s32.totalorder %s106, %s107
    %p121 = scmp.eq.s32.totalorder %s15, 3
    %p122 = por %p120, %p121
    %p124 = scmp.ne.s32.totalorder %s107, %s123
    %p125 = scmp.eq.s32.totalorder %s15, 0
    %p126 = por %p124, %p125
    %p127 = scmp.le.s32.totalorder 1, %s9
    %p128 = scmp.lt.s32.totalorder %s9, 5
    %p129 = pnand %p127, %p128
    %p130 = pneg %p129
    // Predicated region
    $region9: #{upsampling_forward.3} parent=5 // pred_check
      _
    $region10: #{upsampling_forward.3} parent=5 // pred_check_branch
      %132 = sbr.rel (%p129) target = $region12
    $region11: #{upsampling_forward.3} parent=5 // pred_region
      %s133 = ssub.s32 %s9, 1
      // Predicated region
      $region13: #{upsampling_forward.3} parent=11 // pred_check
        %p134 = pneg %p70
      $region14: #{upsampling_forward.3} parent=11 // pred_check_branch
        %136 = sbr.rel (%p134) target = $region16
      $region15: #{upsampling_forward.3} parent=11 // pred_region
        _
      $region16: #{upsampling_forward.3} parent=11 // pred_fallthru
        _
      // Predicated region
      $region17: #{upsampling_forward.3} parent=11 // pred_check
        %p137 = pneg %p91
      $region18: #{upsampling_forward.3} parent=11 // pred_check_branch
        %139 = sbr.rel (%p137) target = $region20
      $region19: #{upsampling_forward.3} parent=11 // pred_region
        _
      $region20: #{upsampling_forward.3} parent=11 // pred_fallthru
        _
    $region12: #{upsampling_forward.3} parent=5 // pred_fallthru
      _
    %p140 = scmp.lt.s32.totalorder %s9, 4
    // Predicated region
    $region21: #{upsampling_forward.3} parent=5 // pred_check
      %p141 = pneg %p140
    $region22: #{upsampling_forward.3} parent=5 // pred_check_branch
      %143 = sbr.rel (%p141) target = $region24
    $region23: #{upsampling_forward.3} parent=5 // pred_region
      // Predicated region
      $region25: #{upsampling_forward.3} parent=23 // pred_check
        %p144 = pneg %p43
      $region26: #{upsampling_forward.3} parent=23 // pred_check_branch
        %146 = sbr.rel (%p144) target = $region28
      $region27: #{upsampling_forward.3} parent=23 // pred_region
        %s147 = smul.u32 4, %s17
        %p148 = scmp.lt.s32.totalorder %s16, 3
        %s149 = scalar_select %p148, %s16, 3
        %p150 = scmp.lt.s32.totalorder %s147, 3
        %s151 = scalar_select %p150, %s147, 3
        %s152 = smul.addr %s149, 4
        %s153 = sadd.s32 %s151, %s152
        %s154 = smul.addr %s153, 8
        %s155 = scalar_lea.vmem %s0, %s154
        %s156 = smul.u32 4, %s17
      $region28: #{upsampling_forward.3} parent=23 // pred_fallthru
        _
    $region24: #{upsampling_forward.3} parent=5 // pred_fallthru
      _
    %p157 = scmp.le.s32.totalorder 1, %s9
    %p158 = scmp.lt.s32.totalorder %s9, 5
    %p159 = pnand %p157, %p158
    %p160 = pneg %p159
    // Predicated region
    $region29: #{upsampling_forward.3} parent=5 // pred_check
      _
    $region30: #{upsampling_forward.3} parent=5 // pred_check_branch
      %162 = sbr.rel (%p159) target = $region32
    $region31: #{upsampling_forward.3} parent=5 // pred_region
      %s163 = ssub.s32 %s9, 1
      %s164 = smul.u32 4, %s19
      %p165 = scmp.lt.s32.totalorder %s18, 3
      %s166 = scalar_select %p165, %s18, 3
      %p167 = scmp.lt.s32.totalorder %s164, 3
      %s168 = scalar_select %p167, %s164, 3
      %s169 = smul.addr %s166, 4
      %s170 = sadd.s32 %s168, %s169
      %s171 = smul.addr %s170, 8
      %s172 = scalar_lea.vmem %s0, %s171
      %p173 = pneg %p49
      %p174 = pneg %p46
      %p175 = pneg %p70
      %p176 = pneg %p67
      %p177 = pneg %p91
      %p178 = pneg %p88
      %p179 = pneg %p119
      %p180 = pneg %p116
      %s181 = smul.u32 4, %s19
      %p182 = scmp.lt.s32.totalorder %s18, 3
      %s183 = scalar_select %p182, %s18, 3
      %p184 = scmp.lt.s32.totalorder %s181, 3
      %s185 = scalar_select %p184, %s181, 3
      %s186 = smul.addr %s183, 4
      %s187 = sadd.s32 %s185, %s186
      %s188 = smul.addr %s187, 8
      %s189 = scalar_lea.vmem %s3, %s188
      %s190 = smul.u32 4, %s19
      %p191 = scmp.lt.s32.totalorder %s18, 3
      %s192 = scalar_select %p191, %s18, 3
      %p193 = scmp.lt.s32.totalorder %s190, 3
      %s194 = scalar_select %p193, %s190, 3
      %s195 = smul.addr %s192, 4
      %s196 = sadd.s32 %s194, %s195
      %s197 = smul.addr %s196, 8
      %s198 = scalar_lea.vmem %s0, %s197
      %s199 = smul.u32 4, %s19
      %s200 = smul.u32 4, %s19
      %p201 = scmp.lt.s32.totalorder %s18, 3
      %s202 = scalar_select %p201, %s18, 3
      %p203 = scmp.lt.s32.totalorder %s200, 3
      %s204 = scalar_select %p203, %s200, 3
      %s205 = smul.addr %s202, 4
      %s206 = sadd.s32 %s204, %s205
      %s207 = smul.addr %s206, 8
      %s208 = scalar_lea.vmem %s3, %s207
      %s209 = smul.u32 4, %s19
      %v210 = vld [vmem:[%s198] sm:$0xff]
      %v211 = vld [vmem:[%s198 + $0x8] sm:$0xff]
      %v212 = vld [vmem:[%s198 + $0x10] sm:$0xff]
      %v213 = vld [vmem:[%s198 + $0x18] sm:$0xff]
      %v214 = vld [vmem:[%s1] sm:$0xff]
      %216 = vset.pattern.permute.xlu0 0
      %217 = vperm.xlu0 %216, %v214
      %v218 = vpop.permute.xlu0 %217
      %v220 = vmul.f32 %v210, %v218
      %v221 = vmul.f32 %v211, %v218
      %v222 = vmul.f32 %v212, %v218
      %v223 = vmul.f32 %v213, %v218
      %v224 = vld [vmem:[%s2] sm:$0xff]
      %226 = vset.pattern.permute.xlu0 0
      %227 = vperm.xlu0 %226, %v224
      %v228 = vpop.permute.xlu0 %227
      %v230 = vadd.f32 %v220, %v228
      %v231 = vadd.f32 %v221, %v228
      %v232 = vadd.f32 %v222, %v228
      %v233 = vadd.f32 %v223, %v228
      %v234 = vmax.f32 %v230, 0.0
      %v235 = vmax.f32 %v231, 0.0
      %v236 = vmax.f32 %v232, 0.0
      %v237 = vmax.f32 %v233, 0.0
      %238 = vst [vmem:[%s208] sm:$0xff] %v234
      %239 = vst [vmem:[%s208 + $0x8] sm:$0xff] %v235
      %240 = vst [vmem:[%s208 + $0x10] sm:$0xff] %v236
      %241 = vst [vmem:[%s208 + $0x18] sm:$0xff] %v237
      %s242 = smul.u32 4, %s19
      %p243 = scmp.lt.s32.totalorder %s18, 3
      %s244 = scalar_select %p243, %s18, 3
      %p245 = scmp.lt.s32.totalorder %s242, 3
      %s246 = scalar_select %p245, %s242, 3
      %s247 = smul.addr %s244, 4
      %s248 = sadd.s32 %s246, %s247
      %s249 = smul.addr %s248, 8
      %s250 = scalar_lea.vmem %s3, %s249
      // Predicated region
      $region33: #{upsampling_forward.3} parent=31 // pred_check
        %p251 = pneg %p116
      $region34: #{upsampling_forward.3} parent=31 // pred_check_branch
        %253 = sbr.rel (%p251) target = $region36
      $region35: #{upsampling_forward.3} parent=31 // pred_region
        %s254 = smul.u32 4, %s19
      $region36: #{upsampling_forward.3} parent=31 // pred_fallthru
        _
    $region32: #{upsampling_forward.3} parent=5 // pred_fallthru
      _
    %p255 = scmp.le.s32.totalorder 2, %s9
    // Predicated region
    $region37: #{upsampling_forward.3} parent=5 // pred_check
      %p256 = pneg %p255
    $region38: #{upsampling_forward.3} parent=5 // pred_check_branch
      %258 = sbr.rel (%p256) target = $region40
    $region39: #{upsampling_forward.3} parent=5 // pred_region
      %s259 = ssub.s32 %s9, 2
      // Predicated region
      $region41: #{upsampling_forward.3} parent=39 // pred_check
        %p260 = pneg %p122
      $region42: #{upsampling_forward.3} parent=39 // pred_check_branch
        %262 = sbr.rel (%p260) target = $region44
      $region43: #{upsampling_forward.3} parent=39 // pred_region
        %s263 = smul.u32 4, %s21
        %p264 = scmp.lt.s32.totalorder %s20, 3
        %s265 = scalar_select %p264, %s20, 3
        %p266 = scmp.lt.s32.totalorder %s263, 3
        %s267 = scalar_select %p266, %s263, 3
        %s268 = smul.addr %s265, 4
        %s269 = sadd.s32 %s267, %s268
        %s270 = smul.addr %s269, 8
        %s271 = scalar_lea.vmem %s3, %s270
      $region44: #{upsampling_forward.3} parent=39 // pred_fallthru
        _
    $region40: #{upsampling_forward.3} parent=5 // pred_fallthru
      _
  $region6: #{upsampling_forward.3} parent=0 // loop_footer
    %s13 = sadd.s32 1, %s9
  $region7: #{upsampling_forward.3} parent=0 // loop_footer_branch
    %8 = sbr.rel target = $region3
  $region8: #{upsampling_forward.3} parent=0 // loop_exit
    _

// kernel: upsampling_forward.2
$region0: #{upsampling_forward.2}
  #allocation0 [shape = 'u32[]', space=smem, size = 0x4, offset = 0x4, fixed_abs, tag = 'smem constant byte address 0x4 - core index']
  #allocation1 [shape = 'u32[72,128]{1,0:T(1,128)}', space=vmem, size = 0x9000, scoped, tag = 'internal scratch']
  %s0 = inlined_call_operand.vmem [shape: bf16[4,8,16], index: 0, kind: input, shape index: {}]
  %s1 = inlined_call_operand.vmem [shape: bf16[4,16,512], index: 1, kind: input, shape index: {}]
  %s2 = inlined_call_operand.vmem [shape: f32[4,8,512], index: 2, kind: output, shape index: {0}]
  %s3 = inlined_call_operand.vmem [shape: f32[4,1,8,1], index: 3, kind: output, shape index: {1}]
  %s4 = inlined_call_operand.vmem [shape: f32[4,1,8,1], index: 4, kind: output, shape index: {2}]
  %5 = xla_tuple %s2, %s3, %s4
  %s6 = sld [smem:[#allocation0]]
  $region57: #{upsampling_forward.2} parent=0
    _
  %s8 = ssub.s32 1, %s6
  %s9 = scalar_select 0, %s8, %s6
  loop: start=0, step=1, limit=6
  $region2: #{upsampling_forward.2} parent=0 // loop_pre_header
    _
  $region3: #{upsampling_forward.2} parent=0 // loop_header
    %s11 = sphi 0, %s15
    %p12 = scmp.ge.s32.totalorder %s11, 6
    %s18 = sphi 0, %s30
    %s19 = sphi 0, %s26
    %s20 = sphi 0, %s18
    %s21 = sphi 0, %s19
    %s22 = sphi 0, %s20
    %s23 = sphi 0, %s21
    %s33 = sphi 0, %s35
    %s36 = sphi 0, %s33
    %s37 = sphi 0, %s36
    %s53 = sphi 0, %s37
    %s61 = sphi 0, %s63
    %s64 = sphi 0, %s61
    %s65 = sphi 0, %s64
    %s81 = sphi 0, %s65
    %s89 = sphi 0, %s91
    %s92 = sphi 0, %s89
    %s93 = sphi 0, %s92
    %s109 = sphi 0, %s93
    %s117 = sphi 0, %s119
    %s120 = sphi 0, %s117
    %s121 = sphi 0, %s120
    %s137 = sphi 0, %s121
    %s145 = sphi 0, %s147
    %s148 = sphi 0, %s145
    %s149 = sphi 0, %s148
    %s165 = sphi 0, %s149
  $region4: #{upsampling_forward.2} parent=0 // loop_header_branch
    %14 = sbr.rel (%p12) target = $region8
  $region5: #{upsampling_forward.2} parent=0 // loop_body
    %s16 = ssub.s32 %s11, 1
    %s17 = ssub.s32 %s11, 2
    %s24 = sadd.s32 1, %s19
    %p25 = scmp.ge.s32.totalorder %s24, 1
    %s26 = scalar_select %p25, 0, %s24
    %s27 = sadd.s32 1, %s18
    %s28 = scalar_select %p25, %s27, %s18
    %p29 = scmp.ge.s32.totalorder %s28, 4
    %s30 = scalar_select %p29, 0, %s28
    %s31 = ssub.s32 %s18, %s30
    %p32 = scmp.eq.s32.totalorder %s31, 0
    %s34 = sadd.s32 %s33, 1
    %s35 = scalar_select %p32, %s33, %s34
    %p38 = pneg %p32
    %p39 = scmp.eq.s32.totalorder %s11, 3
    %p40 = por %p38, %p39
    %p41 = scmp.ne.s32.totalorder %s33, %s36
    %p42 = scmp.eq.s32.totalorder %s11, 0
    %p43 = por %p41, %p42
    %p44 = scmp.ne.s32.totalorder %s33, %s36
    %p45 = scmp.eq.s32.totalorder %s16, 3
    %p46 = por %p44, %p45
    %p47 = scmp.ne.s32.totalorder %s36, %s37
    %p48 = scmp.eq.s32.totalorder %s16, 0
    %p49 = por %p47, %p48
    %p50 = scmp.ne.s32.totalorder %s36, %s37
    %p51 = scmp.eq.s32.totalorder %s17, 3
    %p52 = por %p50, %p51
    %p54 = scmp.ne.s32.totalorder %s37, %s53
    %p55 = scmp.eq.s32.totalorder %s17, 0
    %p56 = por %p54, %p55
    %s57 = ssub.s32 %s18, %s30
    %s58 = ssub.s32 %s19, %s26
    %s59 = sor.u32 %s57, %s58
    %p60 = scmp.eq.s32.totalorder %s59, 0
    %s62 = sadd.s32 %s61, 1
    %s63 = scalar_select %p60, %s61, %s62
    %p66 = pneg %p60
    %p67 = scmp.eq.s32.totalorder %s11, 3
    %p68 = por %p66, %p67
    %p69 = scmp.ne.s32.totalorder %s61, %s64
    %p70 = scmp.eq.s32.totalorder %s11, 0
    %p71 = por %p69, %p70
    %p72 = scmp.ne.s32.totalorder %s61, %s64
    %p73 = scmp.eq.s32.totalorder %s16, 3
    %p74 = por %p72, %p73
    %p75 = scmp.ne.s32.totalorder %s64, %s65
    %p76 = scmp.eq.s32.totalorder %s16, 0
    %p77 = por %p75, %p76
    %p78 = scmp.ne.s32.totalorder %s64, %s65
    %p79 = scmp.eq.s32.totalorder %s17, 3
    %p80 = por %p78, %p79
    %p82 = scmp.ne.s32.totalorder %s65, %s81
    %p83 = scmp.eq.s32.totalorder %s17, 0
    %p84 = por %p82, %p83
    %s85 = ssub.s32 %s18, %s30
    %s86 = ssub.s32 %s19, %s26
    %s87 = sor.u32 %s85, %s86
    %p88 = scmp.eq.s32.totalorder %s87, 0
    %s90 = sadd.s32 %s89, 1
    %s91 = scalar_select %p88, %s89, %s90
    %p94 = pneg %p88
    %p95 = scmp.eq.s32.totalorder %s11, 3
    %p96 = por %p94, %p95
    %p97 = scmp.ne.s32.totalorder %s89, %s92
    %p98 = scmp.eq.s32.totalorder %s11, 0
    %p99 = por %p97, %p98
    %p100 = scmp.ne.s32.totalorder %s89, %s92
    %p101 = scmp.eq.s32.totalorder %s16, 3
    %p102 = por %p100, %p101
    %p103 = scmp.ne.s32.totalorder %s92, %s93
    %p104 = scmp.eq.s32.totalorder %s16, 0
    %p105 = por %p103, %p104
    %p106 = scmp.ne.s32.totalorder %s92, %s93
    %p107 = scmp.eq.s32.totalorder %s17, 3
    %p108 = por %p106, %p107
    %p110 = scmp.ne.s32.totalorder %s93, %s109
    %p111 = scmp.eq.s32.totalorder %s17, 0
    %p112 = por %p110, %p111
    %s113 = ssub.s32 %s18, %s30
    %s114 = ssub.s32 %s19, %s26
    %s115 = sor.u32 %s113, %s114
    %p116 = scmp.eq.s32.totalorder %s115, 0
    %s118 = sadd.s32 %s117, 1
    %s119 = scalar_select %p116, %s117, %s118
    %p122 = pneg %p116
    %p123 = scmp.eq.s32.totalorder %s11, 3
    %p124 = por %p122, %p123
    %p125 = scmp.ne.s32.totalorder %s117, %s120
    %p126 = scmp.eq.s32.totalorder %s11, 0
    %p127 = por %p125, %p126
    %p128 = scmp.ne.s32.totalorder %s117, %s120
    %p129 = scmp.eq.s32.totalorder %s16, 3
    %p130 = por %p128, %p129
    %p131 = scmp.ne.s32.totalorder %s120, %s121
    %p132 = scmp.eq.s32.totalorder %s16, 0
    %p133 = por %p131, %p132
    %p134 = scmp.ne.s32.totalorder %s120, %s121
    %p135 = scmp.eq.s32.totalorder %s17, 3
    %p136 = por %p134, %p135
    %p138 = scmp.ne.s32.totalorder %s121, %s137
    %p139 = scmp.eq.s32.totalorder %s17, 0
    %p140 = por %p138, %p139
    %s141 = ssub.s32 %s18, %s30
    %s142 = ssub.s32 %s19, %s26
    %s143 = sor.u32 %s141, %s142
    %p144 = scmp.eq.s32.totalorder %s143, 0
    %s146 = sadd.s32 %s145, 1
    %s147 = scalar_select %p144, %s145, %s146
    %p150 = pneg %p144
    %p151 = scmp.eq.s32.totalorder %s11, 3
    %p152 = por %p150, %p151
    %p153 = scmp.ne.s32.totalorder %s145, %s148
    %p154 = scmp.eq.s32.totalorder %s11, 0
    %p155 = por %p153, %p154
    %p156 = scmp.ne.s32.totalorder %s145, %s148
    %p157 = scmp.eq.s32.totalorder %s16, 3
    %p158 = por %p156, %p157
    %p159 = scmp.ne.s32.totalorder %s148, %s149
    %p160 = scmp.eq.s32.totalorder %s16, 0
    %p161 = por %p159, %p160
    %p162 = scmp.ne.s32.totalorder %s148, %s149
    %p163 = scmp.eq.s32.totalorder %s17, 3
    %p164 = por %p162, %p163
    %p166 = scmp.ne.s32.totalorder %s149, %s165
    %p167 = scmp.eq.s32.totalorder %s17, 0
    %p168 = por %p166, %p167
    %p169 = scmp.le.s32.totalorder 1, %s11
    %p170 = scmp.lt.s32.totalorder %s11, 5
    %p171 = pnand %p169, %p170
    %p172 = pneg %p171
    // Predicated region
    $region9: #{upsampling_forward.2} parent=5 // pred_check
      _
    $region10: #{upsampling_forward.2} parent=5 // pred_check_branch
      %174 = sbr.rel (%p171) target = $region12
    $region11: #{upsampling_forward.2} parent=5 // pred_region
      %s175 = ssub.s32 %s11, 1
    $region12: #{upsampling_forward.2} parent=5 // pred_fallthru
      _
    %p176 = scmp.lt.s32.totalorder %s11, 4
    // Predicated region
    $region13: #{upsampling_forward.2} parent=5 // pred_check
      %p177 = pneg %p176
    $region14: #{upsampling_forward.2} parent=5 // pred_check_branch
      %179 = sbr.rel (%p177) target = $region16
    $region15: #{upsampling_forward.2} parent=5 // pred_region
      // Predicated region
      $region17: #{upsampling_forward.2} parent=15 // pred_check
        %p180 = pneg %p43
      $region18: #{upsampling_forward.2} parent=15 // pred_check_branch
        %182 = sbr.rel (%p180) target = $region20
      $region19: #{upsampling_forward.2} parent=15 // pred_region
        %p183 = scmp.lt.s32.totalorder %s18, 3
        %s184 = scalar_select %p183, %s18, 3
        %s185 = smul.addr %s184, 4
        %s186 = scalar_lea.vmem %s0, %s185
      $region20: #{upsampling_forward.2} parent=15 // pred_fallthru
        _
      // Predicated region
      $region21: #{upsampling_forward.2} parent=15 // pred_check
        %p187 = pneg %p71
      $region22: #{upsampling_forward.2} parent=15 // pred_check_branch
        %189 = sbr.rel (%p187) target = $region24
      $region23: #{upsampling_forward.2} parent=15 // pred_region
        %s190 = smul.u32 4, %s19
        %p191 = scmp.lt.s32.totalorder %s18, 3
        %s192 = scalar_select %p191, %s18, 3
        %p193 = scmp.lt.s32.totalorder %s190, 3
        %s194 = scalar_select %p193, %s190, 3
        %s195 = smul.addr %s192, 8
        %s196 = sadd.s32 %s194, %s195
        %s197 = smul.addr %s196, 4
        %s198 = scalar_lea.vmem %s1, %s197
        %s199 = smul.u32 4, %s19
      $region24: #{upsampling_forward.2} parent=15 // pred_fallthru
        _
    $region16: #{upsampling_forward.2} parent=5 // pred_fallthru
      _
    %p200 = scmp.le.s32.totalorder 1, %s11
    %p201 = scmp.lt.s32.totalorder %s11, 5
    %p202 = pnand %p200, %p201
    %p203 = pneg %p202
    // Predicated region
    $region25: #{upsampling_forward.2} parent=5 // pred_check
      _
    $region26: #{upsampling_forward.2} parent=5 // pred_check_branch
      %205 = sbr.rel (%p202) target = $region28
    $region27: #{upsampling_forward.2} parent=5 // pred_region
      %s206 = ssub.s32 %s11, 1
      %p207 = scmp.lt.s32.totalorder %s20, 3
      %s208 = scalar_select %p207, %s20, 3
      %s209 = smul.addr %s208, 4
      %s210 = scalar_lea.vmem %s0, %s209
      %p211 = pneg %p49
      %p212 = pneg %p46
      %s213 = smul.u32 4, %s21
      %p214 = scmp.lt.s32.totalorder %s20, 3
      %s215 = scalar_select %p214, %s20, 3
      %p216 = scmp.lt.s32.totalorder %s213, 3
      %s217 = scalar_select %p216, %s213, 3
      %s218 = smul.addr %s215, 8
      %s219 = sadd.s32 %s217, %s218
      %s220 = smul.addr %s219, 4
      %s221 = scalar_lea.vmem %s1, %s220
      %p222 = pneg %p77
      %p223 = pneg %p74
      %p224 = pneg %p105
      %p225 = pneg %p102
      %s226 = smul.u32 4, %s21
      %p227 = scmp.lt.s32.totalorder %s20, 3
      %s228 = scalar_select %p227, %s20, 3
      %p229 = scmp.lt.s32.totalorder %s226, 3
      %s230 = scalar_select %p229, %s226, 3
      %s231 = smul.addr %s228, 4
      %s232 = sadd.s32 %s230, %s231
      %s233 = smul.addr %s232, 8
      %s234 = scalar_lea.vmem %s2, %s233
      %p235 = pneg %p133
      %p236 = pneg %p130
      %p237 = scmp.lt.s32.totalorder %s20, 3
      %s238 = scalar_select %p237, %s20, 3
      %p239 = scmp.lt.s32.totalorder %s21, 0
      %s240 = scalar_select %p239, %s21, 0
      %s241 = sadd.s32 %s240, %s238
      %s242 = smul.addr %s241, 8
      %s243 = scalar_lea.vmem %s3, %s242
      %p244 = pneg %p161
      %p245 = pneg %p158
      %p246 = scmp.lt.s32.totalorder %s20, 3
      %s247 = scalar_select %p246, %s20, 3
      %p248 = scmp.lt.s32.totalorder %s21, 0
      %s249 = scalar_select %p248, %s21, 0
      %s250 = sadd.s32 %s249, %s247
      %s251 = smul.addr %s250, 8
      %s252 = scalar_lea.vmem %s4, %s251
      %p253 = scmp.lt.s32.totalorder %s20, 3
      %s254 = scalar_select %p253, %s20, 3
      %s255 = smul.addr %s254, 4
      %s256 = scalar_lea.vmem %s0, %s255
      %s257 = smul.u32 4, %s21
      %p258 = scmp.lt.s32.totalorder %s20, 3
      %s259 = scalar_select %p258, %s20, 3
      %p260 = scmp.lt.s32.totalorder %s257, 3
      %s261 = scalar_select %p260, %s257, 3
      %s262 = smul.addr %s259, 8
      %s263 = sadd.s32 %s261, %s262
      %s264 = smul.addr %s263, 4
      %s265 = scalar_lea.vmem %s1, %s264
      %s266 = smul.u32 4, %s21
      %s267 = smul.u32 4, %s21
      %p268 = scmp.lt.s32.totalorder %s20, 3
      %s269 = scalar_select %p268, %s20, 3
      %p270 = scmp.lt.s32.totalorder %s267, 3
      %s271 = scalar_select %p270, %s267, 3
      %s272 = smul.addr %s269, 4
      %s273 = sadd.s32 %s271, %s272
      %s274 = smul.addr %s273, 8
      %s275 = scalar_lea.vmem %s2, %s274
      %s276 = smul.u32 4, %s21
      %p277 = scmp.lt.s32.totalorder %s20, 3
      %s278 = scalar_select %p277, %s20, 3
      %p279 = scmp.lt.s32.totalorder %s21, 0
      %s280 = scalar_select %p279, %s21, 0
      %s281 = sadd.s32 %s280, %s278
      %s282 = smul.addr %s281, 8
      %s283 = scalar_lea.vmem %s3, %s282
      %p284 = scmp.lt.s32.totalorder %s20, 3
      %s285 = scalar_select %p284, %s20, 3
      %p286 = scmp.lt.s32.totalorder %s21, 0
      %s287 = scalar_select %p286, %s21, 0
      %s288 = sadd.s32 %s287, %s285
      %s289 = smul.addr %s288, 8
      %s290 = scalar_lea.vmem %s4, %s289
      %v292 = vld [vmem:[%s256] sm:$0xf]
      %v293 = vld [vmem:[%s265] sm:$0xff]
      %v294 = vld [vmem:[%s265 + $0x8] sm:$0xff]
      %v295 = vld [vmem:[%s265 + $0x10] sm:$0xff]
      %v296 = vld [vmem:[%s265 + $0x18] sm:$0xff]
      %v301 = vunpack.c.l.b16 %v293
      %v302 = vunpack.c.h.b16 %v293
      %v303 = vunpack.c.l.b16 %v294
      %v304 = vunpack.c.h.b16 %v294
      %v305 = vunpack.c.l.b16 %v295
      %v306 = vunpack.c.h.b16 %v295
      %v307 = vunpack.c.l.b16 %v296
      %v308 = vunpack.c.h.b16 %v296
      %v309 = vpack.c.b16 %v305, %v301
      %v310 = vpack.c.b16 %v306, %v302
      %v311 = vpack.c.b16 %v307, %v303
      %v312 = vpack.c.b16 %v308, %v304
      %vm317 = vcmask 130048
      %v319 = vsel %vm317, %v292, 0
      %321 = vmatpush.bf16.msra.mxu0 0
      %322 = vmatpush.bf16.msra.mxu0 0
      %323 = vmatpush.bf16.msra.mxu0 0
      %324 = vmatpush.bf16.msra.mxu0 0
      %325 = vmatpush.bf16.msra.mxu0 0
      %326 = vmatpush.bf16.msra.mxu0 0
      %327 = vmatpush.bf16.msra.mxu0 0
      %328 = vmatpush.bf16.msra.mxu0 %v309
      %329 = vmatmul.bf16.gmra.mxu0 %v319
      %v330 = vpop.f32.mrf.mxu0
      %v331 = vadd.f32 0.0, %v330
      %v332 = vpop.f32.mrf.mxu0
      %333 = vdwg.mxu0
      %334 = vmatpush.bf16.msra.mxu0 0
      %335 = vmatpush.bf16.msra.mxu0 0
      %336 = vmatpush.bf16.msra.mxu0 0
      %337 = vmatpush.bf16.msra.mxu0 0
      %338 = vmatpush.bf16.msra.mxu0 0
      %339 = vmatpush.bf16.msra.mxu0 0
      %340 = vmatpush.bf16.msra.mxu0 0
      %341 = vmatpush.bf16.msra.mxu0 %v310
      %342 = vmatmul.bf16.gmra.mxu0 %v319
      %v343 = vpop.f32.mrf.mxu0
      %v344 = vadd.f32 0.0, %v343
      %v345 = vpop.f32.mrf.mxu0
      %346 = vdwg.mxu0
      %347 = vmatpush.bf16.msra.mxu0 0
      %348 = vmatpush.bf16.msra.mxu0 0
      %349 = vmatpush.bf16.msra.mxu0 0
      %350 = vmatpush.bf16.msra.mxu0 0
      %351 = vmatpush.bf16.msra.mxu0 0
      %352 = vmatpush.bf16.msra.mxu0 0
      %353 = vmatpush.bf16.msra.mxu0 0
      %354 = vmatpush.bf16.msra.mxu0 %v311
      %355 = vmatmul.bf16.gmra.mxu0 %v319
      %v356 = vpop.f32.mrf.mxu0
      %v357 = vadd.f32 0.0, %v356
      %v358 = vpop.f32.mrf.mxu0
      %359 = vdwg.mxu0
      %360 = vmatpush.bf16.msra.mxu0 0
      %361 = vmatpush.bf16.msra.mxu0 0
      %362 = vmatpush.bf16.msra.mxu0 0
      %363 = vmatpush.bf16.msra.mxu0 0
      %364 = vmatpush.bf16.msra.mxu0 0
      %365 = vmatpush.bf16.msra.mxu0 0
      %366 = vmatpush.bf16.msra.mxu0 0
      %367 = vmatpush.bf16.msra.mxu0 %v312
      %368 = vmatmul.bf16.gmra.mxu0 %v319
      %v369 = vpop.f32.mrf.mxu0
      %v370 = vadd.f32 0.0, %v369
      %v371 = vpop.f32.mrf.mxu0
      %372 = vdwg.mxu0
      %373 = vst [vmem:[%s275] sm:$0xff] %v331
      %374 = vst [vmem:[%s275 + $0x8] sm:$0xff] %v344
      %375 = vst [vmem:[%s275 + $0x10] sm:$0xff] %v357
      %376 = vst [vmem:[%s275 + $0x18] sm:$0xff] %v370
      %s377 = smul.u32 %s21, 512
      %s378 = ssub.s32 512, %s377
      %s379 = scvt.s32.f32 %s378
      %s380 = smin.f32 %s379, 512.0
      %v381 = vadd.f32 %v331, %v344
      %v382 = vadd.f32 %v381, %v357
      %v383 = vadd.f32 %v382, %v370
      %384 = vadd.xlane.f32.xlu0 %v383
      %v385 = vpop.xlane.xlu0 %384
      %v386 = vstv %s380
      %v387 = vrcp.pop %v386
      %v388 = vmul.f32 %v386, %v387
      %v389 = vsub.f32 1.0, %v388
      %v390 = vmul.f32 %v387, %v389
      %v391 = vadd.f32 %v387, %v390
      %vm392 = vweird.f32 %v386
      %vm393 = vweird.f32 %v387
      %vm394 = vmor %vm392, %vm393
      %v395 = vsel %vm394, %v387, %v391
      %v396 = vand.u32 2147483647, %v386
      %vm397 = vcmp.eq.f32.partialorder %v396, 8.507059e+37
      %v398 = vand.u32 %v386, 2147483648
      %v399 = vor.u32 1.1754944e-38, %v398
      %v400 = vsel %vm397, %v399, %v395
      %v401 = vmul.f32 %v385, %v400
      %v402 = vsub.f32 %v331, %v401
      %v403 = vsub.f32 %v344, %v401
      %v404 = vsub.f32 %v357, %v401
      %v405 = vsub.f32 %v370, %v401
      %v406 = vmul.f32 %v402, %v402
      %v407 = vmul.f32 %v403, %v403
      %v408 = vmul.f32 %v404, %v404
      %v409 = vmul.f32 %v405, %v405
      %v410 = vadd.f32 %v406, %v407
      %v411 = vadd.f32 %v410, %v408
      %v412 = vadd.f32 %v411, %v409
      %413 = vadd.xlane.f32.xlu0 %v412
      %v414 = vpop.xlane.xlu0 %413
      %s415 = ssub.f32 512.0, %s380
      %v416 = vmul.f32 %v401, %v401
      %v417 = vstv %s415
      %v418 = vmul.f32 %v417, %v416
      %v419 = vsub.f32 %v414, %v418
      %vm420 = vcmask 7168
      %421 = vst.msk [vmem:[%s283] sm:$0xff] %vm420, %v385
      %422 = vst.msk [vmem:[%s290] sm:$0xff] %vm420, %v419
      %s423 = smul.u32 4, %s21
      %p424 = scmp.lt.s32.totalorder %s20, 3
      %s425 = scalar_select %p424, %s20, 3
      %p426 = scmp.lt.s32.totalorder %s423, 3
      %s427 = scalar_select %p426, %s423, 3
      %s428 = smul.addr %s425, 4
      %s429 = sadd.s32 %s427, %s428
      %s430 = smul.addr %s429, 8
      %s431 = scalar_lea.vmem %s2, %s430
      %p432 = scmp.lt.s32.totalorder %s20, 3
      %s433 = scalar_select %p432, %s20, 3
      %p434 = scmp.lt.s32.totalorder %s21, 0
      %s435 = scalar_select %p434, %s21, 0
      %s436 = sadd.s32 %s435, %s433
      %s437 = smul.addr %s436, 8
      %s438 = scalar_lea.vmem %s3, %s437
      %p439 = scmp.lt.s32.totalorder %s20, 3
      %s440 = scalar_select %p439, %s20, 3
      %p441 = scmp.lt.s32.totalorder %s21, 0
      %s442 = scalar_select %p441, %s21, 0
      %s443 = sadd.s32 %s442, %s440
      %s444 = smul.addr %s443, 8
      %s445 = scalar_lea.vmem %s4, %s444
      // Predicated region
      $region29: #{upsampling_forward.2} parent=27 // pred_check
        %p446 = pneg %p102
      $region30: #{upsampling_forward.2} parent=27 // pred_check_branch
        %448 = sbr.rel (%p446) target = $region32
      $region31: #{upsampling_forward.2} parent=27 // pred_region
        %s449 = smul.u32 4, %s21
      $region32: #{upsampling_forward.2} parent=27 // pred_fallthru
        _
      // Predicated region
      $region33: #{upsampling_forward.2} parent=27 // pred_check
        %p450 = pneg %p130
      $region34: #{upsampling_forward.2} parent=27 // pred_check_branch
        %452 = sbr.rel (%p450) target = $region36
      $region35: #{upsampling_forward.2} parent=27 // pred_region
        _
      $region36: #{upsampling_forward.2} parent=27 // pred_fallthru
        _
      // Predicated region
      $region37: #{upsampling_forward.2} parent=27 // pred_check
        %p453 = pneg %p158
      $region38: #{upsampling_forward.2} parent=27 // pred_check_branch
        %455 = sbr.rel (%p453) target = $region40
      $region39: #{upsampling_forward.2} parent=27 // pred_region
        _
      $region40: #{upsampling_forward.2} parent=27 // pred_fallthru
        _
    $region28: #{upsampling_forward.2} parent=5 // pred_fallthru
      _
    %p456 = scmp.le.s32.totalorder 2, %s11
    // Predicated region
    $region41: #{upsampling_forward.2} parent=5 // pred_check
      %p457 = pneg %p456
    $region42: #{upsampling_forward.2} parent=5 // pred_check_branch
      %459 = sbr.rel (%p457) target = $region44
    $region43: #{upsampling_forward.2} parent=5 // pred_region
      %s460 = ssub.s32 %s11, 2
      // Predicated region
      $region45: #{upsampling_forward.2} parent=43 // pred_check
        %p461 = pneg %p108
      $region46: #{upsampling_forward.2} parent=43 // pred_check_branch
        %463 = sbr.rel (%p461) target = $region48
      $region47: #{upsampling_forward.2} parent=43 // pred_region
        %s464 = smul.u32 4, %s23
        %p465 = scmp.lt.s32.totalorder %s22, 3
        %s466 = scalar_select %p465, %s22, 3
        %p467 = scmp.lt.s32.totalorder %s464, 3
        %s468 = scalar_select %p467, %s464, 3
        %s469 = smul.addr %s466, 4
        %s470 = sadd.s32 %s468, %s469
        %s471 = smul.addr %s470, 8
        %s472 = scalar_lea.vmem %s2, %s471
      $region48: #{upsampling_forward.2} parent=43 // pred_fallthru
        _
      // Predicated region
      $region49: #{upsampling_forward.2} parent=43 // pred_check
        %p473 = pneg %p136
      $region50: #{upsampling_forward.2} parent=43 // pred_check_branch
        %475 = sbr.rel (%p473) target = $region52
      $region51: #{upsampling_forward.2} parent=43 // pred_region
        %p476 = scmp.lt.s32.totalorder %s22, 3
        %s477 = scalar_select %p476, %s22, 3
        %p478 = scmp.lt.s32.totalorder %s23, 0
        %s479 = scalar_select %p478, %s23, 0
        %s480 = sadd.s32 %s479, %s477
        %s481 = smul.addr %s480, 8
        %s482 = scalar_lea.vmem %s3, %s481
      $region52: #{upsampling_forward.2} parent=43 // pred_fallthru
        _
      // Predicated region
      $region53: #{upsampling_forward.2} parent=43 // pred_check
        %p483 = pneg %p164
      $region54: #{upsampling_forward.2} parent=43 // pred_check_branch
        %485 = sbr.rel (%p483) target = $region56
      $region55: #{upsampling_forward.2} parent=43 // pred_region
        %p486 = scmp.lt.s32.totalorder %s22, 3
        %s487 = scalar_select %p486, %s22, 3
        %p488 = scmp.lt.s32.totalorder %s23, 0
        %s489 = scalar_select %p488, %s23, 0
        %s490 = sadd.s32 %s489, %s487
        %s491 = smul.addr %s490, 8
        %s492 = scalar_lea.vmem %s4, %s491
      $region56: #{upsampling_forward.2} parent=43 // pred_fallthru
        _
    $region44: #{upsampling_forward.2} parent=5 // pred_fallthru
      _
  $region6: #{upsampling_forward.2} parent=0 // loop_footer
    %s15 = sadd.s32 1, %s11
  $region7: #{upsampling_forward.2} parent=0 // loop_footer_branch
    %10 = sbr.rel target = $region3
  $region8: #{upsampling_forward.2} parent=0 // loop_exit
    _

</llo_original>
